<compile_context>
chip_gen: v6e
topology: v6e:2x2x1
jax: 0.10.0
libtpu: 0.0.40
codegen_flags: <defaults>
</compile_context>

<pallas_src>
import math

import jax
import jax.numpy as jnp
from jax.experimental import pallas as pl
from jax.experimental.pallas import tpu as pltpu


def _to_list(v, length):
    if isinstance(v, (list, tuple)):
        assert len(v) == length, (v, length)
        return list(v)
    return [v] * length


def _compute_pads(ndim, side, size):
    """Per-spatial-dim (front, back) pad widths, matching the torch module."""
    n_spatial = ndim - 2
    sides = _to_list(side, n_spatial)
    sizes = _to_list(size, n_spatial)
    pads = []
    for sd, sz in zip(sides, sizes):
        if sd is None or sz < 1:
            pads.append((0, 0))
        elif sd == 'front':
            pads.append((sz, 0))
        elif sd == 'both':
            pads.append((sz // 2, math.ceil(sz / 2)))
        elif sd == 'end':
            pads.append((0, sz))
        else:
            raise ValueError(f'pad side {sd} unknown')
    return pads


def _pick_channel_tile(C, per_channel_step_bytes, budget_bytes):
    """Largest divisor of C whose double-buffered per-step footprint fits budget."""
    best = 1
    for tc in range(1, C + 1):
        if C % tc == 0 and tc * per_channel_step_bytes <= budget_bytes:
            best = tc
    return best


def pad_pallas(x, size, side='both', mode='constant'):
    """Zero-pad the spatial dims of a 4-D NCHW tensor with a Pallas kernel."""
    if mode != 'constant':
        raise NotImplementedError(f'pad mode {mode} not supported in Pallas kernel')
    assert x.ndim == 4, 'this kernel handles NCHW (4-D) inputs'

    N, C, H, W = x.shape
    (ph_f, ph_b), (pw_f, pw_b) = _compute_pads(x.ndim, side, size)
    Ho = H + ph_f + ph_b
    Wo = W + pw_f + pw_b

    itemsize = jnp.dtype(x.dtype).itemsize
    # Double-buffered (x2) input + output block bytes per channel per grid step.
    per_chan_step = 2 * (H * W + Ho * Wo) * itemsize
    # Keep per-step footprint well under default scoped VMEM limits (16/32 MiB).
    TC = _pick_channel_tile(C, per_chan_step, 8 * 1024 * 1024)

    def pad_kernel(x_ref, o_ref):
        dt = o_ref.dtype
        # Zero border strips (each region written exactly once; static guards).
        if ph_f > 0:
            o_ref[:, :, :ph_f, :] = jnp.zeros((1, TC, ph_f, Wo), dt)
        if ph_b > 0:
            o_ref[:, :, ph_f + H:, :] = jnp.zeros((1, TC, ph_b, Wo), dt)
        if pw_f > 0:
            o_ref[:, :, ph_f:ph_f + H, :pw_f] = jnp.zeros((1, TC, H, pw_f), dt)
        if pw_b > 0:
            o_ref[:, :, ph_f:ph_f + H, pw_f + W:] = jnp.zeros((1, TC, H, pw_b), dt)
        # Interior: single copy store (no prior zero fill of this region).
        o_ref[:, :, ph_f:ph_f + H, pw_f:pw_f + W] = x_ref[...]

    in_bytes = N * C * H * W * itemsize
    out_bytes = N * C * Ho * Wo * itemsize
    vmem_limit = int(min(32 * 1024 * 1024,
                         max(16 * 1024 * 1024, (3 * TC * per_chan_step) // 2)))

    out = pl.pallas_call(
        pad_kernel,
        out_shape=jax.ShapeDtypeStruct((N, C, Ho, Wo), x.dtype),
        grid_spec=pltpu.PrefetchScalarGridSpec(
            num_scalar_prefetch=0,
            grid=(N, C // TC),
            in_specs=[pl.BlockSpec((1, TC, H, W), lambda n, c: (n, c, 0, 0))],
            out_specs=pl.BlockSpec((1, TC, Ho, Wo), lambda n, c: (n, c, 0, 0)),
        ),
        compiler_params=pltpu.CompilerParams(
            dimension_semantics=("parallel", "parallel"),
            vmem_limit_bytes=vmem_limit,
        ),
        cost_estimate=pl.CostEstimate(
            flops=0, transcendentals=0, bytes_accessed=int(in_bytes + out_bytes)),
    )(x)
    return out


def _check(x, size, side):
    y = jax.block_until_ready(pad_pallas(x, size, side=side, mode='constant'))
    (ph_f, ph_b), (pw_f, pw_b) = _compute_pads(x.ndim, side, size)
    ref = jnp.pad(x, ((0, 0), (0, 0), (ph_f, ph_b), (pw_f, pw_b)))
    assert y.shape == ref.shape, (y.shape, ref.shape)
    assert y.dtype == x.dtype, (y.dtype, x.dtype)
    assert jnp.allclose(y, ref), f"mismatch vs reference pad (size={size}, side={side})"


if __name__ == "__main__":
    key = jax.random.PRNGKey(0)
    x = jax.random.normal(key, (2, 4, 16, 16), dtype=jnp.float32)

    # Matches the module's forward(x, size) with various configurations.
    _check(x, 5, 'both')                       # pad H and W by (2, 3) each
    _check(x, [3, 4], ['front', 'end'])        # H front-pad 3, W end-pad 4
    _check(x, 0, 'both')                       # no-op pad (pure copy path)

    print("KERNEL_OK")
</pallas_src>

<mosaic_0001>
module attributes {stable_mosaic.version = 11 : i64} {
  func.func @pad_kernel(%arg0: i32, %arg1: i32, %arg2: memref<1x4x16x16xf32, #tpu.memory_space<vmem>>, %arg3: memref<1x4x21x21xf32, #tpu.memory_space<vmem>>) attributes {dimension_semantics = [#tpu.dimension_semantics<parallel>, #tpu.dimension_semantics<parallel>], iteration_bounds = array<i64: 2, 1>, scalar_prefetch = 0 : i64, scratch_operands = 0 : i64, tpu.core_type = #tpu.core_type<tc>, window_params = [{transform_indices = @transform_0, window_bounds = array<i64: 1, 4, 16, 16>}, {transform_indices = @transform_1, window_bounds = array<i64: 1, 4, 21, 21>}]} {
    %cst = arith.constant 0.000000e+00 : f32
    %0 = vector.broadcast %cst : f32 to vector<1x4x2x21xf32>
    %c0 = arith.constant 0 : index
    %c0_0 = arith.constant 0 : index
    %c0_1 = arith.constant 0 : index
    %c0_2 = arith.constant 0 : index
    %1 = vector.load %arg3[%c0, %c0_0, %c0_1, %c0_2] : memref<1x4x21x21xf32, #tpu.memory_space<vmem>>, vector<1x4x2x21xf32>
    tpu.vector_store %arg3[%c0, %c0_0, %c0_1, %c0_2], %0 {strides = array<i32>} : memref<1x4x21x21xf32, #tpu.memory_space<vmem>>, vector<1x4x2x21xf32>,
    %cst_3 = arith.constant 0.000000e+00 : f32
    %2 = vector.broadcast %cst_3 : f32 to vector<1x4x3x21xf32>
    %c0_4 = arith.constant 0 : index
    %c0_5 = arith.constant 0 : index
    %c18 = arith.constant 18 : index
    %c0_6 = arith.constant 0 : index
    %3 = vector.load %arg3[%c0_4, %c0_5, %c18, %c0_6] : memref<1x4x21x21xf32, #tpu.memory_space<vmem>>, vector<1x4x3x21xf32>
    tpu.vector_store %arg3[%c0_4, %c0_5, %c18, %c0_6], %2 {strides = array<i32>} : memref<1x4x21x21xf32, #tpu.memory_space<vmem>>, vector<1x4x3x21xf32>,
    %cst_7 = arith.constant 0.000000e+00 : f32
    %4 = vector.broadcast %cst_7 : f32 to vector<1x4x16x2xf32>
    %c0_8 = arith.constant 0 : index
    %c0_9 = arith.constant 0 : index
    %c2 = arith.constant 2 : index
    %c0_10 = arith.constant 0 : index
    %5 = vector.load %arg3[%c0_8, %c0_9, %c2, %c0_10] : memref<1x4x21x21xf32, #tpu.memory_space<vmem>>, vector<1x4x16x2xf32>
    tpu.vector_store %arg3[%c0_8, %c0_9, %c2, %c0_10], %4 {strides = array<i32>} : memref<1x4x21x21xf32, #tpu.memory_space<vmem>>, vector<1x4x16x2xf32>,
    %cst_11 = arith.constant 0.000000e+00 : f32
    %6 = vector.broadcast %cst_11 : f32 to vector<1x4x16x3xf32>
    %c0_12 = arith.constant 0 : index
    %c0_13 = arith.constant 0 : index
    %c2_14 = arith.constant 2 : index
    %c18_15 = arith.constant 18 : index
    %7 = vector.load %arg3[%c0_12, %c0_13, %c2_14, %c18_15] : memref<1x4x21x21xf32, #tpu.memory_space<vmem>>, vector<1x4x16x3xf32>
    tpu.vector_store %arg3[%c0_12, %c0_13, %c2_14, %c18_15], %6 {strides = array<i32>} : memref<1x4x21x21xf32, #tpu.memory_space<vmem>>, vector<1x4x16x3xf32>,
    %c0_16 = arith.constant 0 : index
    %c0_17 = arith.constant 0 : index
    %c0_18 = arith.constant 0 : index
    %c0_19 = arith.constant 0 : index
    %8 = vector.load %arg2[%c0_16, %c0_17, %c0_18, %c0_19] : memref<1x4x16x16xf32, #tpu.memory_space<vmem>>, vector<1x4x16x16xf32>
    %c0_20 = arith.constant 0 : index
    %c0_21 = arith.constant 0 : index
    %c2_22 = arith.constant 2 : index
    %c2_23 = arith.constant 2 : index
    %9 = vector.load %arg3[%c0_20, %c0_21, %c2_22, %c2_23] : memref<1x4x21x21xf32, #tpu.memory_space<vmem>>, vector<1x4x16x16xf32>
    tpu.vector_store %arg3[%c0_20, %c0_21, %c2_22, %c2_23], %8 {strides = array<i32>} : memref<1x4x21x21xf32, #tpu.memory_space<vmem>>, vector<1x4x16x16xf32>,
    return
  }
  func.func @transform_0(%arg0: i32, %arg1: i32) -> (i32, i32, i32, i32) {
    %c0_i32 = arith.constant 0 : i32
    %c0_i32_0 = arith.constant 0 : i32
    %c0_i32_1 = arith.constant 0 : i32
    return %arg0, %arg1, %c0_i32, %c0_i32_0 : i32, i32, i32, i32
  }
  func.func @transform_1(%arg0: i32, %arg1: i32) -> (i32, i32, i32, i32) {
    %c0_i32 = arith.constant 0 : i32
    %c0_i32_0 = arith.constant 0 : i32
    %c0_i32_1 = arith.constant 0 : i32
    return %arg0, %arg1, %c0_i32, %c0_i32_0 : i32, i32, i32, i32
  }
}

</mosaic_0001>

<llo_original>
// kernel: tpu_custom_call.1
$region0: #{tpu_custom_call.1}
  #allocation0 [shape = 'u32[]', space=smem, size = 0x4, offset = 0x4, fixed_abs, tag = 'smem constant byte address 0x4 - core index']
  #allocation1 [shape = 'u32[144,128]{1,0:T(1,128)}', space=vmem, size = 0x12000, scoped, tag = 'internal scratch']
  %s0 = inlined_call_operand.hbm [shape: f32[2,4,16,16], index: 0, kind: input, shape index: {}]
  %s1 = inlined_call_operand.vmem [shape: f32[2,4,21,21], index: 1, kind: output, shape index: {}]
  %s2 = sld [smem:[#allocation0]]
  $region41: #{tpu_custom_call.1} parent=0
    _
  %s4 = ssub.s32 1, %s2
  %s5 = scalar_select 0, %s4, %s2
  $region1: #{tpu_custom_call.1} parent=0
    #allocation2 [shape = 'u8[65536]{0}', space=vmem, size = 0x10000, scoped, tag = 'input window, operand 0']
    #allocation3 [shape = 's32[2]{0}', space=sflag, size = 0x8, scoped, tag = 'scoped memory for tpu_custom_call.1']
    %6 = vsyncpa [#allocation3], 0
    %s7 = scalar_lea.sflag [#allocation3], 1
    %8 = vsyncpa %s7, 0
    loop: start=0, step=1, limit=4
    $region2: #{tpu_custom_call.1} parent=1 // loop_pre_header
      _
    $region3: #{tpu_custom_call.1} parent=1 // loop_header
      %s10 = sphi 0, %s14
      %p11 = scmp.ge.s32.totalorder %s10, 4
      %s17 = sphi 0, %s29
      %s18 = sphi 0, %s25
      %s19 = sphi 0, %s17
      %s20 = sphi 0, %s18
      %s21 = sphi 0, %s19
      %s22 = sphi 0, %s20
      %s34 = sphi 0, %s36
      %s37 = sphi 0, %s34
      %s38 = sphi 0, %s37
      %s54 = sphi 0, %s38
      %s62 = sphi 0, %s64
      %s65 = sphi 0, %s62
      %s66 = sphi 0, %s65
      %s82 = sphi 0, %s66
    $region4: #{tpu_custom_call.1} parent=1 // loop_header_branch
      %13 = sbr.rel (%p11) target = $region8
    $region5: #{tpu_custom_call.1} parent=1 // loop_body
      %s15 = ssub.s32 %s10, 1
      %s16 = ssub.s32 %s10, 2
      %s23 = sadd.s32 1, %s18
      %p24 = scmp.ge.s32.totalorder %s23, 1
      %s25 = scalar_select %p24, 0, %s23
      %s26 = sadd.s32 1, %s17
      %s27 = scalar_select %p24, %s26, %s17
      %p28 = scmp.ge.s32.totalorder %s27, 2
      %s29 = scalar_select %p28, 0, %s27
      %s30 = ssub.s32 %s17, %s29
      %s31 = ssub.s32 %s18, %s25
      %s32 = sor.u32 %s30, %s31
      %p33 = scmp.eq.s32.totalorder %s32, 0
      %s35 = sadd.s32 %s34, 1
      %s36 = scalar_select %p33, %s34, %s35
      %p39 = pneg %p33
      %p40 = scmp.eq.s32.totalorder %s10, 1
      %p41 = por %p39, %p40
      %p42 = scmp.ne.s32.totalorder %s34, %s37
      %p43 = scmp.eq.s32.totalorder %s10, 0
      %p44 = por %p42, %p43
      %p45 = scmp.ne.s32.totalorder %s34, %s37
      %p46 = scmp.eq.s32.totalorder %s15, 1
      %p47 = por %p45, %p46
      %p48 = scmp.ne.s32.totalorder %s37, %s38
      %p49 = scmp.eq.s32.totalorder %s15, 0
      %p50 = por %p48, %p49
      %p51 = scmp.ne.s32.totalorder %s37, %s38
      %p52 = scmp.eq.s32.totalorder %s16, 1
      %p53 = por %p51, %p52
      %p55 = scmp.ne.s32.totalorder %s38, %s54
      %p56 = scmp.eq.s32.totalorder %s16, 0
      %p57 = por %p55, %p56
      %s58 = ssub.s32 %s17, %s29
      %s59 = ssub.s32 %s18, %s25
      %s60 = sor.u32 %s58, %s59
      %p61 = scmp.eq.s32.totalorder %s60, 0
      %s63 = sadd.s32 %s62, 1
      %s64 = scalar_select %p61, %s62, %s63
      %p67 = pneg %p61
      %p68 = scmp.eq.s32.totalorder %s10, 1
      %p69 = por %p67, %p68
      %p70 = scmp.ne.s32.totalorder %s62, %s65
      %p71 = scmp.eq.s32.totalorder %s10, 0
      %p72 = por %p70, %p71
      %p73 = scmp.ne.s32.totalorder %s62, %s65
      %p74 = scmp.eq.s32.totalorder %s15, 1
      %p75 = por %p73, %p74
      %p76 = scmp.ne.s32.totalorder %s65, %s66
      %p77 = scmp.eq.s32.totalorder %s15, 0
      %p78 = por %p76, %p77
      %p79 = scmp.ne.s32.totalorder %s65, %s66
      %p80 = scmp.eq.s32.totalorder %s16, 1
      %p81 = por %p79, %p80
      %p83 = scmp.ne.s32.totalorder %s66, %s82
      %p84 = scmp.eq.s32.totalorder %s16, 0
      %p85 = por %p83, %p84
      %p86 = scmp.le.s32.totalorder 1, %s10
      %p87 = scmp.lt.s32.totalorder %s10, 3
      %p88 = pnand %p86, %p87
      %p89 = pneg %p88
      // Predicated region
      $region9: #{tpu_custom_call.1} parent=5 // pred_check
        _
      $region10: #{tpu_custom_call.1} parent=5 // pred_check_branch
        %91 = sbr.rel (%p88) target = $region12
      $region11: #{tpu_custom_call.1} parent=5 // pred_region
        %s92 = ssub.s32 %s10, 1
      $region12: #{tpu_custom_call.1} parent=5 // pred_fallthru
        _
      %p93 = scmp.lt.s32.totalorder %s10, 2
      // Predicated region
      $region13: #{tpu_custom_call.1} parent=5 // pred_check
        %p94 = pneg %p93
      $region14: #{tpu_custom_call.1} parent=5 // pred_check_branch
        %96 = sbr.rel (%p94) target = $region16
      $region15: #{tpu_custom_call.1} parent=5 // pred_region
        // Predicated region
        $region17: #{tpu_custom_call.1} parent=15 // pred_check
          %p97 = pneg %p44
        $region18: #{tpu_custom_call.1} parent=15 // pred_check_branch
          %99 = sbr.rel (%p97) target = $region20
        $region19: #{tpu_custom_call.1} parent=15 // pred_region
          %s100 = sand.u32 %s34, 1
          %s101 = scalar_lea.sflag [#allocation3], %s100
          %s102 = sand.u32 %s34, 1
          %s103 = smul.addr %s102, 64
          %s104 = scalar_lea.vmem [#allocation2], %s103
          %s105 = smul.u32 4, %s18
          %s107 = ssub.s32 1024, 1024
          %108 = vsyncadd %s101, %s107
          %s109 = smul.addr %s105, 2
          %s110 = smul.addr %s17, 8
          %s111 = sadd.s32 %s109, %s110
          %s112 = smul.addr %s111, 128
          %s113 = scalar_lea.hbm %s0, %s112
          %s114 = sshll.u32 %s104, 4
          %s115 = int_to_ptr.vmem [resolvable:$true] %s114
          %120 = dma.hbm_to_vmem [thread:$0]  %s113, 1024, %s115, %s101, 128, 128, 8
        $region20: #{tpu_custom_call.1} parent=15 // pred_fallthru
          _
      $region16: #{tpu_custom_call.1} parent=5 // pred_fallthru
        _
      %p121 = scmp.le.s32.totalorder 1, %s10
      %p122 = scmp.lt.s32.totalorder %s10, 3
      %p123 = pnand %p121, %p122
      %p124 = pneg %p123
      // Predicated region
      $region21: #{tpu_custom_call.1} parent=5 // pred_check
        _
      $region22: #{tpu_custom_call.1} parent=5 // pred_check_branch
        %126 = sbr.rel (%p123) target = $region24
      $region23: #{tpu_custom_call.1} parent=5 // pred_region
        %s127 = ssub.s32 %s10, 1
        %s128 = sand.u32 %s37, 1
        %s129 = scalar_lea.sflag [#allocation3], %s128
        %s130 = sand.u32 %s37, 1
        %s131 = smul.addr %s130, 64
        %s132 = scalar_lea.vmem [#allocation2], %s131
        // Predicated region
        $region25: #{tpu_custom_call.1} parent=23 // pred_check
          %p133 = pneg %p50
        $region26: #{tpu_custom_call.1} parent=23 // pred_check_branch
          %135 = sbr.rel (%p133) target = $region28
        $region27: #{tpu_custom_call.1} parent=23 // pred_region
          %136 = dma.done %s129, 1024
        $region28: #{tpu_custom_call.1} parent=23 // pred_fallthru
          _
        %s137 = sand.u32 %s37, 1
        %s138 = scalar_lea.sflag [#allocation3], %s137
        %s139 = sand.u32 %s37, 1
        %s140 = smul.addr %s139, 64
        %s141 = scalar_lea.vmem [#allocation2], %s140
        %p142 = pneg %p50
        %p143 = pneg %p47
        %p144 = pneg %p78
        %p145 = pneg %p75
        %s146 = smul.u32 4, %s20
        %p147 = scmp.lt.s32.totalorder %s19, 1
        %s148 = scalar_select %p147, %s19, 1
        %p149 = scmp.lt.s32.totalorder %s146, 3
        %s150 = scalar_select %p149, %s146, 3
        %s151 = smul.addr %s150, 3
        %s152 = smul.addr %s148, 12
        %s153 = sadd.s32 %s151, %s152
        %s154 = smul.addr %s153, 8
        %s155 = scalar_lea.vmem %s1, %s154
        %s156 = smul.u32 4, %s20
        %s157 = smul.u32 4, %s20
        %p158 = scmp.lt.s32.totalorder %s19, 1
        %s159 = scalar_select %p158, %s19, 1
        %p160 = scmp.lt.s32.totalorder %s157, 3
        %s161 = scalar_select %p160, %s157, 3
        %s162 = smul.addr %s161, 3
        %s163 = smul.addr %s159, 12
        %s164 = sadd.s32 %s162, %s163
        %s165 = smul.addr %s164, 8
        %s166 = scalar_lea.vmem %s1, %s165
        %s167 = smul.u32 4, %s20
        %vm168 = vcmask 164864
        %169 = vst.msk [vmem:[%s166] sm:$0x3] %vm168, 0.0
        %170 = vst.msk [vmem:[%s166 + $0x18] sm:$0x3] %vm168, 0.0
        %171 = vst.msk [vmem:[%s166 + $0x30] sm:$0x3] %vm168, 0.0
        %172 = vst.msk [vmem:[%s166 + $0x48] sm:$0x3] %vm168, 0.0
        %vm173 = vcmask 165888
        %174 = vst.msk [vmem:[%s166 + $0x12] sm:$0x7] %vm173, 0.0
        %175 = vst.msk [vmem:[%s166 + $0x2a] sm:$0x7] %vm173, 0.0
        %176 = vst.msk [vmem:[%s166 + $0x42] sm:$0x7] %vm173, 0.0
        %177 = vst.msk [vmem:[%s166 + $0x5a] sm:$0x7] %vm173, 0.0
        %vm178 = vcmask 15360
        %179 = vst.msk [vmem:[%s166 + $0x2] sm:$0xff] %vm178, 0.0
        %180 = vst.msk [vmem:[%s166 + $0xa] sm:$0xff] %vm178, 0.0
        %181 = vst.msk [vmem:[%s166 + $0x1a] sm:$0xff] %vm178, 0.0
        %182 = vst.msk [vmem:[%s166 + $0x22] sm:$0xff] %vm178, 0.0
        %183 = vst.msk [vmem:[%s166 + $0x32] sm:$0xff] %vm178, 0.0
        %184 = vst.msk [vmem:[%s166 + $0x3a] sm:$0xff] %vm178, 0.0
        %185 = vst.msk [vmem:[%s166 + $0x4a] sm:$0xff] %vm178, 0.0
        %186 = vst.msk [vmem:[%s166 + $0x52] sm:$0xff] %vm178, 0.0
        %vm187 = vcmask 171152
        %188 = vst.msk [vmem:[%s166 + $0x2] sm:$0xff] %vm187, 0.0
        %189 = vst.msk [vmem:[%s166 + $0xa] sm:$0xff] %vm187, 0.0
        %190 = vst.msk [vmem:[%s166 + $0x1a] sm:$0xff] %vm187, 0.0
        %191 = vst.msk [vmem:[%s166 + $0x22] sm:$0xff] %vm187, 0.0
        %192 = vst.msk [vmem:[%s166 + $0x32] sm:$0xff] %vm187, 0.0
        %193 = vst.msk [vmem:[%s166 + $0x3a] sm:$0xff] %vm187, 0.0
        %194 = vst.msk [vmem:[%s166 + $0x4a] sm:$0xff] %vm187, 0.0
        %195 = vst.msk [vmem:[%s166 + $0x52] sm:$0xff] %vm187, 0.0
        %v196 = vld [vmem:[%s132] sm:$0xff]
        %v197 = vld [vmem:[%s132 + $0x8] sm:$0xff]
        %v198 = vld [vmem:[%s132 + $0x10] sm:$0xff]
        %v199 = vld [vmem:[%s132 + $0x18] sm:$0xff]
        %v200 = vld [vmem:[%s132 + $0x20] sm:$0xff]
        %v201 = vld [vmem:[%s132 + $0x28] sm:$0xff]
        %v202 = vld [vmem:[%s132 + $0x30] sm:$0xff]
        %v203 = vld [vmem:[%s132 + $0x38] sm:$0xff]
        %212 = vrot.lane.b32.xlu0 %v196, 2
        %v213 = vpop.permute.xlu0 %212
        %214 = vrot.lane.b32.xlu0 %v197, 2
        %v215 = vpop.permute.xlu0 %214
        %216 = vrot.lane.b32.xlu0 %v198, 2
        %v217 = vpop.permute.xlu0 %216
        %218 = vrot.lane.b32.xlu0 %v199, 2
        %v219 = vpop.permute.xlu0 %218
        %220 = vrot.lane.b32.xlu0 %v200, 2
        %v221 = vpop.permute.xlu0 %220
        %222 = vrot.lane.b32.xlu0 %v201, 2
        %v223 = vpop.permute.xlu0 %222
        %224 = vrot.lane.b32.xlu0 %v202, 2
        %v225 = vpop.permute.xlu0 %224
        %226 = vrot.lane.b32.xlu0 %v203, 2
        %v227 = vpop.permute.xlu0 %226
        %vm236 = vcmask 146448
        %237 = vst.msk [vmem:[%s166 + $0x2] sm:$0xff] %vm236, %v213
        %238 = vst.msk [vmem:[%s166 + $0xa] sm:$0xff] %vm236, %v215
        %239 = vst.msk [vmem:[%s166 + $0x1a] sm:$0xff] %vm236, %v217
        %240 = vst.msk [vmem:[%s166 + $0x22] sm:$0xff] %vm236, %v219
        %241 = vst.msk [vmem:[%s166 + $0x32] sm:$0xff] %vm236, %v221
        %242 = vst.msk [vmem:[%s166 + $0x3a] sm:$0xff] %vm236, %v223
        %243 = vst.msk [vmem:[%s166 + $0x4a] sm:$0xff] %vm236, %v225
        %244 = vst.msk [vmem:[%s166 + $0x52] sm:$0xff] %vm236, %v227
        %s245 = smul.u32 4, %s20
        %p246 = scmp.lt.s32.totalorder %s19, 1
        %s247 = scalar_select %p246, %s19, 1
        %p248 = scmp.lt.s32.totalorder %s245, 3
        %s249 = scalar_select %p248, %s245, 3
        %s250 = smul.addr %s249, 3
        %s251 = smul.addr %s247, 12
        %s252 = sadd.s32 %s250, %s251
        %s253 = smul.addr %s252, 8
        %s254 = scalar_lea.vmem %s1, %s253
        // Predicated region
        $region29: #{tpu_custom_call.1} parent=23 // pred_check
          %p255 = pneg %p75
        $region30: #{tpu_custom_call.1} parent=23 // pred_check_branch
          %257 = sbr.rel (%p255) target = $region32
        $region31: #{tpu_custom_call.1} parent=23 // pred_region
          %s258 = smul.u32 4, %s20
        $region32: #{tpu_custom_call.1} parent=23 // pred_fallthru
          _
      $region24: #{tpu_custom_call.1} parent=5 // pred_fallthru
        _
      %p259 = scmp.le.s32.totalorder 2, %s10
      // Predicated region
      $region33: #{tpu_custom_call.1} parent=5 // pred_check
        %p260 = pneg %p259
      $region34: #{tpu_custom_call.1} parent=5 // pred_check_branch
        %262 = sbr.rel (%p260) target = $region36
      $region35: #{tpu_custom_call.1} parent=5 // pred_region
        %s263 = ssub.s32 %s10, 2
        // Predicated region
        $region37: #{tpu_custom_call.1} parent=35 // pred_check
          %p264 = pneg %p81
        $region38: #{tpu_custom_call.1} parent=35 // pred_check_branch
          %266 = sbr.rel (%p264) target = $region40
        $region39: #{tpu_custom_call.1} parent=35 // pred_region
          %s267 = smul.u32 4, %s22
          %p268 = scmp.lt.s32.totalorder %s21, 1
          %s269 = scalar_select %p268, %s21, 1
          %p270 = scmp.lt.s32.totalorder %s267, 3
          %s271 = scalar_select %p270, %s267, 3
          %s272 = smul.addr %s271, 3
          %s273 = smul.addr %s269, 12
          %s274 = sadd.s32 %s272, %s273
          %s275 = smul.addr %s274, 8
          %s276 = scalar_lea.vmem %s1, %s275
        $region40: #{tpu_custom_call.1} parent=35 // pred_fallthru
          _
      $region36: #{tpu_custom_call.1} parent=5 // pred_fallthru
        _
    $region6: #{tpu_custom_call.1} parent=1 // loop_footer
      %s14 = sadd.s32 1, %s10
    $region7: #{tpu_custom_call.1} parent=1 // loop_footer_branch
      %9 = sbr.rel target = $region3
    $region8: #{tpu_custom_call.1} parent=1 // loop_exit
      _
    %277 = vsyncpa [#allocation3], 1
    %s278 = scalar_lea.sflag [#allocation3], 1
    %279 = vsyncpa %s278, 1

</llo_original>
